<compile_context>
chip_gen: v7x
topology: tpu7x:2x2x1
jax: 0.10.0
libtpu: 0.0.40
codegen_flags: <defaults>
</compile_context>

<pallas_src>
import functools

import jax
import jax.numpy as jnp
from jax import lax
from jax.experimental import pallas as pl
from jax.experimental.pallas import tpu as pltpu

_LANES = 128
_SUBLANES = 8
_CHUNK_ROWS = 64        # rows folded per inner-loop iteration (8 vregs / operand)
_MAX_TILE_ROWS = 4096   # 4096 * 128 * 4 B = 2 MiB per f32 input block


def _round_up(x, m):
    return ((x + m - 1) // m) * m


def _sign_quantile_kernel(pred_ref, tgt_ref, acc_ref, *,
                          aq, nbq, lam, use_max, rows, tile_rows, chunk_rows):
    """Accumulates per-lane partial sums of (ql + lam*sm) into acc_ref (8,128)."""
    i = pl.program_id(0)

    @pl.when(i == 0)
    def _():
        acc_ref[...] = jnp.zeros_like(acc_ref)

    n_chunks = tile_rows // chunk_rows

    def tile_partial(masked):
        # Stream the (tile_rows, 128) tile in chunk_rows-row chunks so the
        # elementwise intermediates never spill to VMEM; carry is 8 vregs.
        def body(c, carry):
            r0 = pl.multiple_of(c * chunk_rows, chunk_rows)
            p = pred_ref[pl.ds(r0, chunk_rows), :].astype(jnp.float32)
            t = tgt_ref[pl.ds(r0, chunk_rows), :].astype(jnp.float32)
            diff = t - p
            if use_max:
                # aq >= 0 and -nbq >= 0, so this equals
                # where(diff >= 0, aq*diff, (-nbq)*(-diff)) with fewer VALU ops.
                ql = jnp.maximum(aq * diff, nbq * diff)
            else:
                # Exact where() form (nbq*diff == beta*(1-q)*(-diff)).
                ql = jnp.where(diff >= 0.0, aq * diff, nbq * diff)
            contrib = ql
            if lam != 0.0:
                # relu(-sign(t)*p) == |p| where t and p have strictly opposite
                # signs, else 0 (NaN handling differs negligibly from torch).
                sm = jnp.where(t * p < 0.0, jnp.abs(p), 0.0)
                contrib = contrib + lam * sm
            if masked:
                # Only compiled for the ragged last grid step: zero out rows
                # at/after the static true row count (also kills any garbage
                # read from the padded part of a ragged block).
                grow = (i * tile_rows + r0
                        + lax.broadcasted_iota(jnp.int32, (chunk_rows, _LANES), 0))
                contrib = jnp.where(grow < rows, contrib, 0.0)
            return carry + contrib

        carry = lax.fori_loop(0, n_chunks, body,
                              jnp.zeros((chunk_rows, _LANES), jnp.float32))
        # Fold (chunk_rows,128) -> (8,128): vreg-aligned regroup + VPU adds.
        return carry.reshape(chunk_rows // _SUBLANES, _SUBLANES, _LANES).sum(axis=0)

    if rows % tile_rows == 0:          # static: no ragged tile, no masking at all
        acc_ref[...] += tile_partial(masked=False)
    else:
        last = pl.num_programs(0) - 1

        @pl.when(i != last)
        def _():
            acc_ref[...] += tile_partial(masked=False)

        @pl.when(i == last)
        def _():
            acc_ref[...] += tile_partial(masked=True)


def sign_quantile_loss_pallas(pred, target, q=0.5, lambda_weight=0.01,
                              alpha=1.0, beta=1.0):
    assert pred.shape == target.shape, "pred/target must have the same shape"
    assert 0.0 <= q <= 1.0, "q (quantile) should be in [0, 1]"
    # TODO(synk): PyTorch-style broadcasting of mismatched shapes is not supported;
    # same-shape inputs only (the common case for this loss).

    n_elem = pred.size
    p_flat = jnp.ravel(pred)
    t_flat = jnp.ravel(target)

    rem = n_elem % _LANES
    if rem:
        # Only sub-row padding (< 128 elements). Zero padding contributes
        # exactly 0 to both loss sums. Shapes with n_elem % 128 == 0 take the
        # copy-free path (ravel/reshape are layout-only).
        pad = _LANES - rem
        p_flat = jnp.pad(p_flat, (0, pad))
        t_flat = jnp.pad(t_flat, (0, pad))
    rows = p_flat.size // _LANES

    p2d = p_flat.reshape(rows, _LANES)
    t2d = t_flat.reshape(rows, _LANES)

    chunk_rows = min(_CHUNK_ROWS, _round_up(rows, _SUBLANES))
    tile_rows = min(_MAX_TILE_ROWS, _round_up(rows, chunk_rows))
    steps = pl.cdiv(rows, tile_rows)

    q = float(q)
    alpha = float(alpha)
    beta = float(beta)
    aq = alpha * q
    bq = beta * (1.0 - q)
    use_max = (aq >= 0.0) and (bq >= 0.0)   # maximum() rewrite only valid then

    kernel = functools.partial(
        _sign_quantile_kernel,
        aq=aq, nbq=-bq, lam=float(lambda_weight), use_max=use_max,
        rows=rows, tile_rows=tile_rows, chunk_rows=chunk_rows)

    acc = pl.pallas_call(
        kernel,
        out_shape=jax.ShapeDtypeStruct((_SUBLANES, _LANES), jnp.float32),
        grid_spec=pltpu.PrefetchScalarGridSpec(
            num_scalar_prefetch=0,
            grid=(steps,),
            in_specs=[pl.BlockSpec((tile_rows, _LANES), lambda i: (i, 0)),
                      pl.BlockSpec((tile_rows, _LANES), lambda i: (i, 0))],
            out_specs=pl.BlockSpec((_SUBLANES, _LANES), lambda i: (0, 0)),
        ),
        compiler_params=pltpu.CompilerParams(
            dimension_semantics=("arbitrary",),
            vmem_limit_bytes=32 * 1024 * 1024),
    )(p2d, t2d)

    # Tiny epilogue: one 1024-element reduce + mean scale (single fused XLA op).
    return jnp.sum(acc) / jnp.float32(n_elem)


class SignQuantileLoss:
    """JAX/Pallas port of the PyTorch SignQuantileLoss module."""

    def __init__(self, q=0.5, lambda_weight=0.01, alpha=1.0, beta=1.0):
        self.q = q
        self.lambda_weight = lambda_weight
        self.alpha = alpha
        self.beta = beta

    def __call__(self, pred, target):
        return sign_quantile_loss_pallas(pred, target, self.q,
                                         self.lambda_weight,
                                         self.alpha, self.beta)


def _reference(pred, target, q=0.5, lambda_weight=0.01, alpha=1.0, beta=1.0):
    diff = target - pred
    ql = jnp.mean(jnp.where(diff >= 0, alpha * q * diff,
                            beta * (1 - q) * (-diff)))
    sm = jnp.mean(jax.nn.relu(-jnp.sign(target) * pred))
    return ql + lambda_weight * sm


if __name__ == "__main__":
    key = jax.random.PRNGKey(0)
    k1, k2, k3, k4 = jax.random.split(key, 4)

    # NCHW-style input: batch=2, channels=4, spatial=16x16 -> 2048 elements
    # (multiple of 128 -> copy-free streaming path).
    pred = jax.random.normal(k1, (2, 4, 16, 16), dtype=jnp.float32)
    target = jax.random.normal(k2, (2, 4, 16, 16), dtype=jnp.float32)

    loss_fn = SignQuantileLoss(q=0.3, lambda_weight=0.01, alpha=1.0, beta=1.0)
    out = jax.block_until_ready(loss_fn(pred, target))
    ref = jax.block_until_ready(
        _reference(pred, target, q=0.3, lambda_weight=0.01, alpha=1.0, beta=1.0))
    assert jnp.allclose(out, ref, rtol=1e-5, atol=1e-6), (out, ref)

    # Ragged shape (105 elements): exercises the <128-element pad + the
    # in-kernel masked last (ragged) tile.
    pred2 = jax.random.normal(k3, (3, 5, 7), dtype=jnp.float32)
    target2 = jax.random.normal(k4, (3, 5, 7), dtype=jnp.float32)
    out2 = jax.block_until_ready(
        sign_quantile_loss_pallas(pred2, target2, q=0.7, lambda_weight=0.05,
                                  alpha=2.0, beta=0.5))
    ref2 = jax.block_until_ready(
        _reference(pred2, target2, q=0.7, lambda_weight=0.05, alpha=2.0, beta=0.5))
    assert jnp.allclose(out2, ref2, rtol=1e-5, atol=1e-6), (out2, ref2)

    print("KERNEL_OK")
</pallas_src>

<mosaic_0001>
module attributes {stable_mosaic.version = 11 : i64} {
  func.func @_sign_quantile_kernel(%arg0: i32, %arg1: memref<16x128xf32, #tpu.memory_space<vmem>>, %arg2: memref<16x128xf32, #tpu.memory_space<vmem>>, %arg3: memref<8x128xf32, #tpu.memory_space<vmem>>) attributes {dimension_semantics = [#tpu.dimension_semantics<arbitrary>], iteration_bounds = array<i64: 1>, scalar_prefetch = 0 : i64, scratch_operands = 0 : i64, tpu.core_type = #tpu.core_type<tc>, window_params = [{transform_indices = @transform_0, window_bounds = array<i64: 16, 128>}, {transform_indices = @transform_1, window_bounds = array<i64: 16, 128>}, {pipeline_mode = #tpu.pipeline_mode<synchronous>, transform_indices = @transform_2, window_bounds = array<i64: 8, 128>}]} {
    %c0_i32 = arith.constant 0 : i32
    %0 = arith.cmpi eq, %arg0, %c0_i32 : i32
    %1 = arith.extui %0 : i1 to i32
    %c0_i32_0 = arith.constant 0 : i32
    %2 = arith.cmpi ne, %1, %c0_i32_0 : i32
    scf.if %2 {
      %cst_13 = arith.constant 0.000000e+00 : f32
      %31 = vector.broadcast %cst_13 : f32 to vector<8x128xf32>
      %c0_14 = arith.constant 0 : index
      %c0_15 = arith.constant 0 : index
      %32 = vector.load %arg3[%c0_14, %c0_15] : memref<8x128xf32, #tpu.memory_space<vmem>>, vector<8x128xf32>
      tpu.vector_store %arg3[%c0_14, %c0_15], %31 {strides = array<i32>} : memref<8x128xf32, #tpu.memory_space<vmem>>, vector<8x128xf32>,
    } else {
    }
    %c0 = arith.constant 0 : index
    %c0_1 = arith.constant 0 : index
    %3 = vector.load %arg3[%c0, %c0_1] : memref<8x128xf32, #tpu.memory_space<vmem>>, vector<8x128xf32>
    %cst = arith.constant 0.000000e+00 : f32
    %4 = vector.broadcast %cst : f32 to vector<16x128xf32>
    %c0_i32_2 = arith.constant 0 : i32
    %c16_i32 = arith.constant 16 : i32
    %5 = arith.muli %c0_i32_2, %c16_i32 : i32
    %6 = tpu.assume_multiple %5, 16 : i32
    %7 = arith.index_cast %6 : i32 to index
    %c0_3 = arith.constant 0 : index
    %8 = vector.load %arg1[%7, %c0_3] : memref<16x128xf32, #tpu.memory_space<vmem>>, vector<16x128xf32>
    %9 = arith.index_cast %6 : i32 to index
    %c0_4 = arith.constant 0 : index
    %10 = vector.load %arg2[%9, %c0_4] : memref<16x128xf32, #tpu.memory_space<vmem>>, vector<16x128xf32>
    %11 = arith.subf %10, %8 : vector<16x128xf32>
    %cst_5 = arith.constant 3.000000e-01 : f32
    %12 = vector.broadcast %cst_5 : f32 to vector<16x128xf32>
    %13 = arith.mulf %12, %11 : vector<16x128xf32>
    %cst_6 = arith.constant -0.699999988 : f32
    %14 = vector.broadcast %cst_6 : f32 to vector<16x128xf32>
    %15 = arith.mulf %14, %11 : vector<16x128xf32>
    %16 = arith.maximumf %13, %15 : vector<16x128xf32>
    %17 = arith.mulf %10, %8 : vector<16x128xf32>
    %cst_7 = arith.constant 0.000000e+00 : f32
    %18 = vector.broadcast %cst_7 : f32 to vector<16x128xf32>
    %19 = arith.cmpf olt, %17, %18 : vector<16x128xf32>
    %20 = math.absf %8 : vector<16x128xf32>
    %cst_8 = arith.constant 0.000000e+00 : f32
    %21 = vector.broadcast %cst_8 : f32 to vector<16x128xf32>
    %22 = arith.select %19, %20, %21 : vector<16x128xi1>, vector<16x128xf32>
    %cst_9 = arith.constant 0.00999999977 : f32
    %23 = vector.broadcast %cst_9 : f32 to vector<16x128xf32>
    %24 = arith.mulf %23, %22 : vector<16x128xf32>
    %25 = arith.addf %16, %24 : vector<16x128xf32>
    %26 = arith.addf %4, %25 : vector<16x128xf32>
    %c1_i32 = arith.constant 1 : i32
    %27 = vector.shape_cast %26 : vector<16x128xf32> to vector<2x8x128xf32>
    %cst_10 = arith.constant dense<0.000000e+00> : vector<8x128xf32>
    %28 = vector.multi_reduction <add>, %27, %cst_10 [0] : vector<2x8x128xf32> to vector<8x128xf32>
    %29 = arith.addf %3, %28 : vector<8x128xf32>
    %c0_11 = arith.constant 0 : index
    %c0_12 = arith.constant 0 : index
    %30 = vector.load %arg3[%c0_11, %c0_12] : memref<8x128xf32, #tpu.memory_space<vmem>>, vector<8x128xf32>
    tpu.vector_store %arg3[%c0_11, %c0_12], %29 {strides = array<i32>} : memref<8x128xf32, #tpu.memory_space<vmem>>, vector<8x128xf32>,
    return
  }
  func.func @transform_0(%arg0: i32) -> (i32, i32) {
    %c0_i32 = arith.constant 0 : i32
    %c0_i32_0 = arith.constant 0 : i32
    return %arg0, %c0_i32 : i32, i32
  }
  func.func @transform_1(%arg0: i32) -> (i32, i32) {
    %c0_i32 = arith.constant 0 : i32
    %c0_i32_0 = arith.constant 0 : i32
    return %arg0, %c0_i32 : i32, i32
  }
  func.func @transform_2(%arg0: i32) -> (i32, i32) {
    %c0_i32 = arith.constant 0 : i32
    %c0_i32_0 = arith.constant 0 : i32
    %c0_i32_1 = arith.constant 0 : i32
    return %c0_i32, %c0_i32_0 : i32, i32
  }
}

</mosaic_0001>

<llo_original>
// kernel: tpu_custom_call.1
$region0: #{tpu_custom_call.1}
  #allocation0 [shape = 'u32[]', space=smem, size = 0x4, offset = 0x4, fixed_abs, tag = 'smem constant byte address 0x4 - core index']
  #allocation1 [shape = 'u32[144,128]{1,0:T(1,128)}', space=vmem, size = 0x12000, scoped, tag = 'internal scratch']
  %s0 = inlined_call_operand.hbm [shape: f32[16,128], index: 0, kind: input, shape index: {}]
  %s1 = inlined_call_operand.hbm [shape: f32[16,128], index: 1, kind: input, shape index: {}]
  %s2 = inlined_call_operand.hbm [shape: f32[8,128], index: 2, kind: output, shape index: {}]
  %s3 = sld [smem:[#allocation0]]
  $region30: #{tpu_custom_call.1} parent=0
    _
  %s5 = ssub.s32 1, %s3
  %s6 = scalar_select 0, %s5, %s3
  $region1: #{tpu_custom_call.1} parent=0
    #allocation2 [shape = 'u8[8192]{0}', space=vmem, size = 0x2000, scoped, tag = 'input window, operand 0, single buffered']
    #allocation3 [shape = 's32[1]{0}', space=sflag, size = 0x4, scoped, tag = 'scoped memory for tpu_custom_call.1']
    #allocation4 [shape = 's32[1]{0}', space=sflag, size = 0x4, scoped, tag = 'scoped memory for tpu_custom_call.1']
    #allocation5 [shape = 'u8[8192]{0}', space=vmem, size = 0x2000, scoped, tag = 'input window, operand 1, single buffered']
    #allocation6 [shape = 's32[1]{0}', space=sflag, size = 0x4, scoped, tag = 'scoped memory for tpu_custom_call.1']
    #allocation7 [shape = 'u8[4096]{0}', space=vmem, size = 0x1000, scoped, tag = 'output window, operand 0, single buffered']
    %7 = vsyncpa [#allocation3], 0
    %8 = vsyncpa [#allocation6], 0
    %9 = vsyncpa [#allocation4], 0
    // Predicated region
    $region2: #{tpu_custom_call.1} parent=1 // pred_check
      _
    $region3: #{tpu_custom_call.1} parent=1 // pred_check_branch
      %11 = sbr.rel (0) target = $region5
    $region4: #{tpu_custom_call.1} parent=1 // pred_region
      %s13 = ssub.s32 256, 256
      %14 = vsyncadd [#allocation3], %s13
      %s15 = sshll.u32 [#allocation2], 4
      %s16 = int_to_ptr.vmem [resolvable:$true] %s15
      %21 = dma.hbm_to_vmem [thread:$0]  %s0, 256, %s16, [#allocation3], 128, 128, 8
    $region5: #{tpu_custom_call.1} parent=1 // pred_fallthru
      _
    // Predicated region
    $region6: #{tpu_custom_call.1} parent=1 // pred_check
      _
    $region7: #{tpu_custom_call.1} parent=1 // pred_check_branch
      %23 = sbr.rel (0) target = $region9
    $region8: #{tpu_custom_call.1} parent=1 // pred_region
      %s25 = ssub.s32 256, 256
      %26 = vsyncadd [#allocation6], %s25
      %s27 = sshll.u32 [#allocation5], 4
      %s28 = int_to_ptr.vmem [resolvable:$true] %s27
      %33 = dma.hbm_to_vmem [thread:$0]  %s1, 256, %s28, [#allocation6], 128, 128, 8
    $region9: #{tpu_custom_call.1} parent=1 // pred_fallthru
      _
    // Predicated region
    $region10: #{tpu_custom_call.1} parent=1 // pred_check
      _
    $region11: #{tpu_custom_call.1} parent=1 // pred_check_branch
      %35 = sbr.rel (0) target = $region13
    $region12: #{tpu_custom_call.1} parent=1 // pred_region
      %36 = dma.done [#allocation3], 256
    $region13: #{tpu_custom_call.1} parent=1 // pred_fallthru
      _
    // Predicated region
    $region14: #{tpu_custom_call.1} parent=1 // pred_check
      _
    $region15: #{tpu_custom_call.1} parent=1 // pred_check_branch
      %38 = sbr.rel (0) target = $region17
    $region16: #{tpu_custom_call.1} parent=1 // pred_region
      %39 = dma.done [#allocation6], 256
    $region17: #{tpu_custom_call.1} parent=1 // pred_fallthru
      _
    %p40 = scmp.eq.s32.totalorder 0, 0
    // Predicated region
    $region18: #{tpu_custom_call.1} parent=1 // pred_check
      %p41 = pneg %p40
    $region19: #{tpu_custom_call.1} parent=1 // pred_check_branch
      %43 = sbr.rel (%p41) target = $region21
    $region20: #{tpu_custom_call.1} parent=1 // pred_region
      %44 = vst [vmem:[#allocation7] sm:$0xff] 0.0
    $region21: #{tpu_custom_call.1} parent=1 // pred_fallthru
      _
    %v45 = vld [vmem:[#allocation7] sm:$0xff]
    %v46 = vld [vmem:[#allocation2] sm:$0xff]
    %v47 = vld [vmem:[#allocation2 + $0x8] sm:$0xff]
    %v48 = vld [vmem:[#allocation5] sm:$0xff]
    %v49 = vld [vmem:[#allocation5 + $0x8] sm:$0xff]
    %v50 = vsub.f32 %v48, %v46
    %v51 = vsub.f32 %v49, %v47
    %v52 = vmul.f32 %v50, 0.3
    %v53 = vmul.f32 %v51, 0.3
    %v54 = vmul.f32 %v50, -0.7
    %v55 = vmul.f32 %v51, -0.7
    %v56 = vmax.f32 %v52, %v54
    %v57 = vmax.f32 %v53, %v55
    %v58 = vmul.f32 %v48, %v46
    %v59 = vmul.f32 %v49, %v47
    %vm60 = vcmp.lt.f32.partialorder %v58, 0.0
    %vm61 = vcmp.lt.f32.partialorder %v59, 0.0
    %v62 = vand.u32 2147483647, %v46
    %v63 = vand.u32 2147483647, %v47
    %v64 = vsel %vm60, %v62, 0.0
    %v65 = vsel %vm61, %v63, 0.0
    %v66 = vmul.f32 %v64, 0.01
    %v67 = vmul.f32 %v65, 0.01
    %v68 = vadd.f32 %v56, %v66
    %v69 = vadd.f32 %v57, %v67
    %v70 = vadd.f32 %v68, 0.0
    %v71 = vadd.f32 %v69, 0.0
    %v72 = vadd.f32 %v70, %v71
    %v73 = vadd.f32 %v45, %v72
    %74 = vst [vmem:[#allocation7] sm:$0xff] %v73
    // Predicated region
    $region22: #{tpu_custom_call.1} parent=1 // pred_check
      _
    $region23: #{tpu_custom_call.1} parent=1 // pred_check_branch
      %76 = sbr.rel (0) target = $region25
    $region24: #{tpu_custom_call.1} parent=1 // pred_region
      %s78 = ssub.s32 128, 128
      %79 = vsyncadd [#allocation4], %s78
      %s81 = sshll.u32 [#allocation7], 4
      %s82 = int_to_ptr.vmem [resolvable:$true] %s81
      %84 = dma.vmem_to_hbm [thread:$0]  %s82, 128, %s2, [#allocation4]
    $region25: #{tpu_custom_call.1} parent=1 // pred_fallthru
      _
    // Predicated region
    $region26: #{tpu_custom_call.1} parent=1 // pred_check
      _
    $region27: #{tpu_custom_call.1} parent=1 // pred_check_branch
      %86 = sbr.rel (0) target = $region29
    $region28: #{tpu_custom_call.1} parent=1 // pred_region
      %87 = dma.done [#allocation4], 128
    $region29: #{tpu_custom_call.1} parent=1 // pred_fallthru
      _
    %88 = vsyncpa [#allocation3], 1
    %89 = vsyncpa [#allocation6], 1
    %90 = vsyncpa [#allocation4], 1

</llo_original>
